<compile_context>
chip_gen: v7x
topology: tpu7x:2x2x1
jax: 0.10.0
libtpu: 0.0.40
codegen_flags: <defaults>
</compile_context>

<pallas_src>
import functools

import jax
import jax.numpy as jnp
from jax import lax
from jax.experimental import pallas as pl
from jax.experimental.pallas import tpu as pltpu

_PAD_VALUE = -1.0e30     # finite "-inf" sentinel for pool padding (bf16-safe)
_PAD_THRESH = -1.0e29    # anything below this is treated as padding


def _round_up(x, m):
    return ((x + m - 1) // m) * m


# ----------------------------- kernel bodies --------------------------------
def _branches(taps_ref, w_ref, sel_ref, *, gcin):
    """Packed pre-BN tile: conv(main) + placed maxpool(ext).

    taps_ref: (TR, KP)      bf16, lane-packed taps (tap, pixel, cin), sentinel pad
    w_ref   : (KP, GCout)   bf16, block-diagonal placed conv weights (zero pad rows)
    sel_ref : (gcin, GCout) bf16, 0/1 selection matrix placing pool channels
    returns : (TR, GCout)   f32
    """
    t = taps_ref[...]                                        # bf16
    # Conv branch: sentinel -> 0 (== zero padding), single big bf16 matmul.
    lhs = jnp.where(t > _PAD_THRESH, t, jnp.zeros_like(t))
    acc = jnp.dot(lhs, w_ref[...], preferred_element_type=jnp.float32)
    # Pool branch: max over the 9 tap lane-groups (sentinel == -inf padding).
    ext = t[:, 0:gcin]
    for k in range(1, 9):
        ext = jnp.maximum(ext, t[:, k * gcin:(k + 1) * gcin])
    # Drop pooled channels into their (disjoint) output lanes via the MXU.
    ext_placed = jnp.dot(ext, sel_ref[...], preferred_element_type=jnp.float32)
    return acc + ext_placed


def _stats_kernel(taps_ref, w_ref, sel_ref, sum_ref, ssq_ref, *,
                  gcin, tr, tiles_per_core, rows, need_mask):
    """Phase 1: per-lane sum / sum-of-squares, per-core partial accumulators."""
    i = pl.program_id(1)

    @pl.when(i == 0)
    def _():
        sum_ref[...] = jnp.zeros_like(sum_ref)
        ssq_ref[...] = jnp.zeros_like(ssq_ref)

    out = _branches(taps_ref, w_ref, sel_ref, gcin=gcin)      # (TR, GCout) f32
    if need_mask:  # exclude rows added by the ragged-tile padding
        tile_idx = pl.program_id(0) * tiles_per_core + i
        rid = tile_idx * tr + lax.broadcasted_iota(jnp.int32, out.shape, 0)
        out = jnp.where(rid < rows, out, 0.0)
    sum_ref[...] += jnp.sum(out, axis=0, keepdims=True)[None]
    ssq_ref[...] += jnp.sum(out * out, axis=0, keepdims=True)[None]


def _normalize_kernel(taps_ref, w_ref, sel_ref, scale_ref, shift_ref, out_ref,
                      *, gcin):
    """Phase 2: recompute branches, apply folded BN scale/shift + ReLU."""
    out = _branches(taps_ref, w_ref, sel_ref, gcin=gcin)      # (TR, GCout) f32
    y = out * scale_ref[...] + shift_ref[...]
    out_ref[...] = jnp.maximum(y, 0.0)


# ------------------------------ host wrapper ---------------------------------
def initial_block_forward(x_nchw, w_conv, gamma, beta, *,
                          group=8, tile_rows=2048):
    """x_nchw: (N, Cin, H, W); w_conv: (Cmid, Cin, 3, 3); gamma/beta: (Cout,)."""
    n, cin, h, w = x_nchw.shape
    cmid = w_conv.shape[0]
    cout = cmid + cin
    assert (group * cout) % 128 == 0, (group, cout)   # lane-dense packed output
    ho = (h + 2 - 3) // 2 + 1
    wo = (w + 2 - 3) // 2 + 1
    m = n * ho * wo
    # TODO(synk): support m % group != 0 via per-lane masking of the last row.
    assert m % group == 0, (m, group)
    rows = m // group                     # packed rows (group pixels per row)
    gcin = group * cin                    # pool lane width
    gcout = group * cout                  # packed output lane width (128 here)
    kfull = 9 * gcin                      # fused contraction width
    kp = _round_up(kfull, 128)            # zero-pad K for lane-dense MXU passes

    # --- shared tap tensor, packed along lanes, bf16 end-to-end --------------
    x_bf = jnp.transpose(x_nchw, (0, 2, 3, 1)).astype(jnp.bfloat16)   # NHWC
    xp = jnp.pad(x_bf, ((0, 0), (1, 1), (1, 1), (0, 0)),
                 constant_values=_PAD_VALUE)
    taps = []
    for ky in range(3):
        for kx in range(3):
            t = xp[:, ky:ky + 2 * ho:2, kx:kx + 2 * wo:2, :]    # (N,Ho,Wo,Cin)
            taps.append(t.reshape(rows, gcin))
    taps_wide = jnp.concatenate(taps, axis=-1)                  # (rows, 9*gcin)

    # --- tiling: multiple-of-16 rows, cdiv-padded (no giant fallback block) --
    tr = _round_up(min(tile_rows, _round_up(rows, 16)), 16)
    rows_padded = _round_up(rows, tr)
    num_tiles = rows_padded // tr
    taps_wide = jnp.pad(taps_wide,
                        ((0, rows_padded - rows), (0, kp - kfull)))  # zeros

    # --- fused block-diagonal conv weights + pool selection matrix (bf16) ----
    w_taps = jnp.transpose(w_conv, (2, 3, 1, 0)).reshape(9, cin, cmid)
    w_full = jnp.concatenate(
        [w_taps.astype(jnp.float32), jnp.zeros((9, cin, cin), jnp.float32)],
        axis=-1)                                                # (9,cin,cout)
    eye_g = jnp.eye(group, dtype=jnp.float32)
    w_big = jnp.einsum('gh,kco->kgcho', eye_g, w_full).reshape(kfull, gcout)
    w_big = jnp.pad(w_big, ((0, kp - kfull), (0, 0))).astype(jnp.bfloat16)
    sel_base = jnp.concatenate(
        [jnp.zeros((cin, cmid), jnp.float32), jnp.eye(cin, dtype=jnp.float32)],
        axis=-1)                                                # (cin,cout)
    sel = jnp.einsum('gh,co->gcho', eye_g, sel_base)
    sel = sel.reshape(gcin, gcout).astype(jnp.bfloat16)

    # --- compiler params / cost estimates ------------------------------------
    vmem_limit = 32 * 1024 * 1024          # safe for v7x's 64 MiB physical VMEM
    flops = 2 * rows_padded * kp * gcout + 2 * rows_padded * gcin * gcout
    bytes_shared = rows_padded * kp * 2 + kp * gcout * 2 + gcin * gcout * 2
    cost_stats = pl.CostEstimate(flops=flops, transcendentals=0,
                                 bytes_accessed=bytes_shared + 4 * gcout * 4)
    cost_norm = pl.CostEstimate(flops=flops + 3 * rows_padded * gcout,
                                transcendentals=0,
                                bytes_accessed=bytes_shared
                                + rows_padded * gcout * 4 + 2 * gcout * 4)

    # --- phase 1: per-lane sum / sum-of-squares (single pass) ----------------
    # Leading "parallel" axis gives v7x's second TensorCore its own partials.
    ncore = 2 if (num_tiles >= 2 and num_tiles % 2 == 0) else 1
    tiles_per_core = num_tiles // ncore
    acc_spec = pl.BlockSpec((1, 1, gcout), lambda c, i: (c, 0, 0))
    sums, ssqs = pl.pallas_call(
        functools.partial(_stats_kernel, gcin=gcin, tr=tr,
                          tiles_per_core=tiles_per_core, rows=rows,
                          need_mask=(rows_padded != rows)),
        out_shape=(jax.ShapeDtypeStruct((ncore, 1, gcout), jnp.float32),
                   jax.ShapeDtypeStruct((ncore, 1, gcout), jnp.float32)),
        grid=(ncore, tiles_per_core),
        in_specs=[pl.BlockSpec((tr, kp),
                               lambda c, i: (c * tiles_per_core + i, 0)),
                  pl.BlockSpec((kp, gcout), lambda c, i: (0, 0)),     # resident
                  pl.BlockSpec((gcin, gcout), lambda c, i: (0, 0))],  # resident
        out_specs=(acc_spec, acc_spec),
        compiler_params=pltpu.CompilerParams(
            dimension_semantics=("parallel", "arbitrary"),
            vmem_limit_bytes=vmem_limit),
        cost_estimate=cost_stats,
    )(taps_wide, w_big, sel)

    # --- host: fold packed partials into per-channel BN scale/shift ----------
    # (single-pass E[x^2]-E[x]^2 in f32; fine at these magnitudes/sizes)
    csum = jnp.sum(sums, axis=(0, 1)).reshape(group, cout).sum(axis=0)
    cssq = jnp.sum(ssqs, axis=(0, 1)).reshape(group, cout).sum(axis=0)
    mean = csum / m
    var = jnp.maximum(cssq / m - mean * mean, 0.0)        # biased var
    inv = lax.rsqrt(var + 1e-5)
    scale_c = gamma.astype(jnp.float32) * inv
    shift_c = beta.astype(jnp.float32) - mean * scale_c
    scale_p = jnp.tile(scale_c, group).reshape(1, gcout)
    shift_p = jnp.tile(shift_c, group).reshape(1, gcout)

    # --- phase 2: normalize + ReLU, lane-dense (TR, 128) stores --------------
    out_packed = pl.pallas_call(
        functools.partial(_normalize_kernel, gcin=gcin),
        out_shape=jax.ShapeDtypeStruct((rows_padded, gcout), jnp.float32),
        grid=(num_tiles,),
        in_specs=[pl.BlockSpec((tr, kp), lambda i: (i, 0)),
                  pl.BlockSpec((kp, gcout), lambda i: (0, 0)),     # resident
                  pl.BlockSpec((gcin, gcout), lambda i: (0, 0)),   # resident
                  pl.BlockSpec((1, gcout), lambda i: (0, 0)),      # resident
                  pl.BlockSpec((1, gcout), lambda i: (0, 0))],     # resident
        out_specs=pl.BlockSpec((tr, gcout), lambda i: (i, 0)),
        compiler_params=pltpu.CompilerParams(
            dimension_semantics=("parallel",),
            vmem_limit_bytes=vmem_limit),
        cost_estimate=cost_norm,
    )(taps_wide, w_big, sel, scale_p, shift_p)

    # (rows_padded, G*Cout) -> (M, Cout) -> (N, Ho, Wo, Cout) -> NCHW
    out = out_packed[:rows].reshape(m, cout).reshape(n, ho, wo, cout)
    return jnp.transpose(out, (0, 3, 1, 2))


# --------------------------- pure-JAX reference -------------------------------
def initial_block_reference(x_nchw, w_conv, gamma, beta):
    main = lax.conv_general_dilated(
        x_nchw, w_conv, window_strides=(2, 2), padding=((1, 1), (1, 1)),
        dimension_numbers=("NCHW", "OIHW", "NCHW"))
    ext = lax.reduce_window(
        x_nchw, -jnp.inf, lax.max, (1, 1, 3, 3), (1, 1, 2, 2),
        padding=((0, 0), (0, 0), (1, 1), (1, 1)))
    out = jnp.concatenate([main, ext], axis=1)
    mean = jnp.mean(out, axis=(0, 2, 3), keepdims=True)
    var = jnp.mean((out - mean) ** 2, axis=(0, 2, 3), keepdims=True)
    y = (out - mean) * lax.rsqrt(var + 1e-5)
    y = y * gamma[None, :, None, None] + beta[None, :, None, None]
    return jnp.maximum(y, 0.0)


if __name__ == "__main__":
    # Shapes implied by the module: in_channels=3 (RGB), out_channels=16.
    N, C_IN, H, W = 2, 3, 16, 16
    C_OUT = 16
    C_MID = C_OUT - 3

    key = jax.random.PRNGKey(0)
    kx, kw, kg, kb = jax.random.split(key, 4)
    x = jax.random.normal(kx, (N, C_IN, H, W), dtype=jnp.float32)
    w_conv = 0.1 * jax.random.normal(kw, (C_MID, C_IN, 3, 3), dtype=jnp.float32)
    gamma = 1.0 + 0.1 * jax.random.normal(kg, (C_OUT,), dtype=jnp.float32)
    beta = 0.1 * jax.random.normal(kb, (C_OUT,), dtype=jnp.float32)

    out = jax.block_until_ready(initial_block_forward(x, w_conv, gamma, beta))

    # Reference built from bf16-quantized input AND conv weights (the kernel's
    # MXU operands are bf16 with f32 accumulation), so tolerances stay tight.
    x_q = x.astype(jnp.bfloat16).astype(jnp.float32)
    w_q = w_conv.astype(jnp.bfloat16).astype(jnp.float32)
    ref = jax.block_until_ready(initial_block_reference(x_q, w_q, gamma, beta))

    assert out.shape == (N, C_OUT, H // 2, W // 2), out.shape
    max_err = float(jnp.max(jnp.abs(out - ref)))
    assert max_err < 5e-4, max_err

    print("KERNEL_OK")
</pallas_src>

<mosaic_0001>
module attributes {stable_mosaic.version = 11 : i64} {
  func.func @_stats_kernel(%arg0: i32, %arg1: i32, %arg2: memref<16x256xbf16, #tpu.memory_space<vmem>>, %arg3: memref<256x128xbf16, #tpu.memory_space<vmem>>, %arg4: memref<24x128xbf16, #tpu.memory_space<vmem>>, %arg5: memref<1x1x128xf32, #tpu.memory_space<vmem>>, %arg6: memref<1x1x128xf32, #tpu.memory_space<vmem>>) attributes {dimension_semantics = [#tpu.dimension_semantics<parallel>, #tpu.dimension_semantics<arbitrary>], iteration_bounds = array<i64: 1, 1>, scalar_prefetch = 0 : i64, scratch_operands = 0 : i64, tpu.core_type = #tpu.core_type<tc>, window_params = [{transform_indices = @transform_0, window_bounds = array<i64: 16, 256>}, {pipeline_mode = #tpu.pipeline_mode<synchronous>, transform_indices = @transform_1, window_bounds = array<i64: 256, 128>}, {pipeline_mode = #tpu.pipeline_mode<synchronous>, transform_indices = @transform_2, window_bounds = array<i64: 24, 128>}, {transform_indices = @transform_3, window_bounds = array<i64: 1, 1, 128>}, {transform_indices = @transform_4, window_bounds = array<i64: 1, 1, 128>}]} {
    %c0_i32 = arith.constant 0 : i32
    %0 = arith.cmpi eq, %arg1, %c0_i32 : i32
    %1 = arith.extui %0 : i1 to i32
    %c0_i32_0 = arith.constant 0 : i32
    %2 = arith.cmpi ne, %1, %c0_i32_0 : i32
    scf.if %2 {
      %cst_23 = arith.constant 0.000000e+00 : f32
      %43 = vector.broadcast %cst_23 : f32 to vector<1x1x128xf32>
      %c0_24 = arith.constant 0 : index
      %c0_25 = arith.constant 0 : index
      %c0_26 = arith.constant 0 : index
      %44 = vector.load %arg5[%c0_24, %c0_25, %c0_26] : memref<1x1x128xf32, #tpu.memory_space<vmem>>, vector<1x1x128xf32>
      tpu.vector_store %arg5[%c0_24, %c0_25, %c0_26], %43 {strides = array<i32>} : memref<1x1x128xf32, #tpu.memory_space<vmem>>, vector<1x1x128xf32>,
      %cst_27 = arith.constant 0.000000e+00 : f32
      %45 = vector.broadcast %cst_27 : f32 to vector<1x1x128xf32>
      %c0_28 = arith.constant 0 : index
      %c0_29 = arith.constant 0 : index
      %c0_30 = arith.constant 0 : index
      %46 = vector.load %arg6[%c0_28, %c0_29, %c0_30] : memref<1x1x128xf32, #tpu.memory_space<vmem>>, vector<1x1x128xf32>
      tpu.vector_store %arg6[%c0_28, %c0_29, %c0_30], %45 {strides = array<i32>} : memref<1x1x128xf32, #tpu.memory_space<vmem>>, vector<1x1x128xf32>,
    } else {
    }
    %c0 = arith.constant 0 : index
    %c0_1 = arith.constant 0 : index
    %3 = vector.load %arg2[%c0, %c0_1] : memref<16x256xbf16, #tpu.memory_space<vmem>>, vector<16x256xbf16>
    %cst = arith.constant -1.002730e+29 : bf16
    %4 = vector.broadcast %cst : bf16 to vector<16x256xbf16>
    %5 = arith.cmpf ogt, %3, %4 : vector<16x256xbf16>
    %cst_2 = arith.constant 0.000000e+00 : bf16
    %6 = vector.broadcast %cst_2 : bf16 to vector<16x256xbf16>
    %7 = arith.select %5, %3, %6 : vector<16x256xi1>, vector<16x256xbf16>
    %c0_3 = arith.constant 0 : index
    %c0_4 = arith.constant 0 : index
    %8 = vector.load %arg3[%c0_3, %c0_4] : memref<256x128xbf16, #tpu.memory_space<vmem>>, vector<256x128xbf16>
    %cst_5 = arith.constant dense<0.000000e+00> : vector<16x128xf32>
    %9 = tpu.matmul %7, %8, %cst_5 {dimension_numbers = #tpu.dot_dimension_numbers<[1], [0], [0], [1], [0, 0, 1, 1], [], []>} : vector<16x256xbf16>, vector<256x128xbf16>, vector<16x128xf32> -> vector<16x128xf32>
    %10 = vector.extract_strided_slice %3 {offsets = [0, 0], sizes = [16, 24], strides = [1, 1]} : vector<16x256xbf16> to vector<16x24xbf16>
    %11 = vector.extract_strided_slice %3 {offsets = [0, 24], sizes = [16, 24], strides = [1, 1]} : vector<16x256xbf16> to vector<16x24xbf16>
    %12 = arith.maximumf %10, %11 : vector<16x24xbf16>
    %13 = vector.extract_strided_slice %3 {offsets = [0, 48], sizes = [16, 24], strides = [1, 1]} : vector<16x256xbf16> to vector<16x24xbf16>
    %14 = arith.maximumf %12, %13 : vector<16x24xbf16>
    %15 = vector.extract_strided_slice %3 {offsets = [0, 72], sizes = [16, 24], strides = [1, 1]} : vector<16x256xbf16> to vector<16x24xbf16>
    %16 = arith.maximumf %14, %15 : vector<16x24xbf16>
    %17 = vector.extract_strided_slice %3 {offsets = [0, 96], sizes = [16, 24], strides = [1, 1]} : vector<16x256xbf16> to vector<16x24xbf16>
    %18 = arith.maximumf %16, %17 : vector<16x24xbf16>
    %19 = vector.extract_strided_slice %3 {offsets = [0, 120], sizes = [16, 24], strides = [1, 1]} : vector<16x256xbf16> to vector<16x24xbf16>
    %20 = arith.maximumf %18, %19 : vector<16x24xbf16>
    %21 = vector.extract_strided_slice %3 {offsets = [0, 144], sizes = [16, 24], strides = [1, 1]} : vector<16x256xbf16> to vector<16x24xbf16>
    %22 = arith.maximumf %20, %21 : vector<16x24xbf16>
    %23 = vector.extract_strided_slice %3 {offsets = [0, 168], sizes = [16, 24], strides = [1, 1]} : vector<16x256xbf16> to vector<16x24xbf16>
    %24 = arith.maximumf %22, %23 : vector<16x24xbf16>
    %25 = vector.extract_strided_slice %3 {offsets = [0, 192], sizes = [16, 24], strides = [1, 1]} : vector<16x256xbf16> to vector<16x24xbf16>
    %26 = arith.maximumf %24, %25 : vector<16x24xbf16>
    %c0_6 = arith.constant 0 : index
    %c0_7 = arith.constant 0 : index
    %27 = vector.load %arg4[%c0_6, %c0_7] : memref<24x128xbf16, #tpu.memory_space<vmem>>, vector<24x128xbf16>
    %cst_8 = arith.constant dense<0.000000e+00> : vector<16x128xf32>
    %28 = tpu.matmul %26, %27, %cst_8 {dimension_numbers = #tpu.dot_dimension_numbers<[1], [0], [0], [1], [0, 0, 1, 1], [], []>} : vector<16x24xbf16>, vector<24x128xbf16>, vector<16x128xf32> -> vector<16x128xf32>
    %29 = arith.addf %9, %28 : vector<16x128xf32>
    %c0_9 = arith.constant 0 : index
    %c0_10 = arith.constant 0 : index
    %c0_11 = arith.constant 0 : index
    %30 = vector.load %arg5[%c0_9, %c0_10, %c0_11] : memref<1x1x128xf32, #tpu.memory_space<vmem>>, vector<1x1x128xf32>
    %cst_12 = arith.constant dense<0.000000e+00> : vector<128xf32>
    %31 = vector.multi_reduction <add>, %29, %cst_12 [0] : vector<16x128xf32> to vector<128xf32>
    %32 = vector.shape_cast %31 : vector<128xf32> to vector<1x128xf32>
    %33 = vector.shape_cast %32 : vector<1x128xf32> to vector<1x1x128xf32>
    %34 = arith.addf %30, %33 : vector<1x1x128xf32>
    %c0_13 = arith.constant 0 : index
    %c0_14 = arith.constant 0 : index
    %c0_15 = arith.constant 0 : index
    %35 = vector.load %arg5[%c0_13, %c0_14, %c0_15] : memref<1x1x128xf32, #tpu.memory_space<vmem>>, vector<1x1x128xf32>
    tpu.vector_store %arg5[%c0_13, %c0_14, %c0_15], %34 {strides = array<i32>} : memref<1x1x128xf32, #tpu.memory_space<vmem>>, vector<1x1x128xf32>,
    %c0_16 = arith.constant 0 : index
    %c0_17 = arith.constant 0 : index
    %c0_18 = arith.constant 0 : index
    %36 = vector.load %arg6[%c0_16, %c0_17, %c0_18] : memref<1x1x128xf32, #tpu.memory_space<vmem>>, vector<1x1x128xf32>
    %37 = arith.mulf %29, %29 : vector<16x128xf32>
    %cst_19 = arith.constant dense<0.000000e+00> : vector<128xf32>
    %38 = vector.multi_reduction <add>, %37, %cst_19 [0] : vector<16x128xf32> to vector<128xf32>
    %39 = vector.shape_cast %38 : vector<128xf32> to vector<1x128xf32>
    %40 = vector.shape_cast %39 : vector<1x128xf32> to vector<1x1x128xf32>
    %41 = arith.addf %36, %40 : vector<1x1x128xf32>
    %c0_20 = arith.constant 0 : index
    %c0_21 = arith.constant 0 : index
    %c0_22 = arith.constant 0 : index
    %42 = vector.load %arg6[%c0_20, %c0_21, %c0_22] : memref<1x1x128xf32, #tpu.memory_space<vmem>>, vector<1x1x128xf32>
    tpu.vector_store %arg6[%c0_20, %c0_21, %c0_22], %41 {strides = array<i32>} : memref<1x1x128xf32, #tpu.memory_space<vmem>>, vector<1x1x128xf32>,
    return
  }
  func.func @transform_0(%arg0: i32, %arg1: i32) -> (i32, i32) {
    %c1_i32 = arith.constant 1 : i32
    %0 = arith.muli %arg0, %c1_i32 : i32
    %1 = arith.addi %0, %arg1 : i32
    %c0_i32 = arith.constant 0 : i32
    %c0_i32_0 = arith.constant 0 : i32
    return %1, %c0_i32 : i32, i32
  }
  func.func @transform_1(%arg0: i32, %arg1: i32) -> (i32, i32) {
    %c0_i32 = arith.constant 0 : i32
    %c0_i32_0 = arith.constant 0 : i32
    %c0_i32_1 = arith.constant 0 : i32
    return %c0_i32, %c0_i32_0 : i32, i32
  }
  func.func @transform_2(%arg0: i32, %arg1: i32) -> (i32, i32) {
    %c0_i32 = arith.constant 0 : i32
    %c0_i32_0 = arith.constant 0 : i32
    %c0_i32_1 = arith.constant 0 : i32
    return %c0_i32, %c0_i32_0 : i32, i32
  }
  func.func @transform_3(%arg0: i32, %arg1: i32) -> (i32, i32, i32) {
    %c0_i32 = arith.constant 0 : i32
    %c0_i32_0 = arith.constant 0 : i32
    %c0_i32_1 = arith.constant 0 : i32
    return %arg0, %c0_i32, %c0_i32_0 : i32, i32, i32
  }
  func.func @transform_4(%arg0: i32, %arg1: i32) -> (i32, i32, i32) {
    %c0_i32 = arith.constant 0 : i32
    %c0_i32_0 = arith.constant 0 : i32
    %c0_i32_1 = arith.constant 0 : i32
    return %arg0, %c0_i32, %c0_i32_0 : i32, i32, i32
  }
}

</mosaic_0001>

<llo_original>
// kernel: tpu_custom_call.1
$region0: #{tpu_custom_call.1}
  #allocation0 [shape = 'u32[]', space=smem, size = 0x4, offset = 0x4, fixed_abs, tag = 'smem constant byte address 0x4 - core index']
  #allocation1 [shape = 'u32[144,128]{1,0:T(1,128)}', space=vmem, size = 0x12000, scoped, tag = 'internal scratch']
  %s0 = inlined_call_operand.hbm [shape: bf16[16,256], index: 0, kind: input, shape index: {}]
  %s1 = inlined_call_operand.hbm [shape: bf16[256,128], index: 1, kind: input, shape index: {}]
  %s2 = inlined_call_operand.hbm [shape: bf16[24,128], index: 2, kind: input, shape index: {}]
  %s3 = inlined_call_operand.hbm [shape: f32[1,1,128], index: 3, kind: output, shape index: {0}]
  %s4 = inlined_call_operand.hbm [shape: f32[1,1,128], index: 4, kind: output, shape index: {1}]
  %5 = xla_tuple %s3, %s4
  %s6 = sld [smem:[#allocation0]]
  $region46: #{tpu_custom_call.1} parent=0
    _
  %s8 = ssub.s32 1, %s6
  %s9 = scalar_select 0, %s8, %s6
  $region1: #{tpu_custom_call.1} parent=0
    #allocation2 [shape = 'u8[8192]{0}', space=vmem, size = 0x2000, scoped, tag = 'input window, operand 0, single buffered']
    #allocation3 [shape = 's32[1]{0}', space=sflag, size = 0x4, scoped, tag = 'scoped memory for tpu_custom_call.1']
    #allocation4 [shape = 's32[1]{0}', space=sflag, size = 0x4, scoped, tag = 'scoped memory for tpu_custom_call.1']
    #allocation5 [shape = 'u8[65536]{0}', space=vmem, size = 0x10000, scoped, tag = 'input window, operand 1, single buffered']
    #allocation6 [shape = 's32[1]{0}', space=sflag, size = 0x4, scoped, tag = 'scoped memory for tpu_custom_call.1']
    #allocation7 [shape = 'u8[6144]{0}', space=vmem, size = 0x1800, scoped, tag = 'input window, operand 2, single buffered']
    #allocation8 [shape = 'u8[512]{0}', space=vmem, size = 0x400, scoped, tag = 'output window, operand 0, single buffered']
    #allocation9 [shape = 'u8[512]{0}', space=vmem, size = 0x400, scoped, tag = 'output window, operand 1, single buffered']
    #allocation10 [shape = 's32[1]{0}', space=sflag, size = 0x4, scoped, tag = 'scoped memory for tpu_custom_call.1']
    %10 = vsyncpa [#allocation3], 0
    %11 = vsyncpa [#allocation6], 0
    %12 = vsyncpa [#allocation4], 0
    %13 = vsyncpa [#allocation10], 0
    // Predicated region
    $region2: #{tpu_custom_call.1} parent=1 // pred_check
      _
    $region3: #{tpu_custom_call.1} parent=1 // pred_check_branch
      %15 = sbr.rel (0) target = $region5
    $region4: #{tpu_custom_call.1} parent=1 // pred_region
      %s16 = sadd.s32 0, 0
      %s17 = smul.u32 2, %s16
      %s19 = ssub.s32 256, 256
      %20 = vsyncadd [#allocation3], %s19
      %s21 = smul.addr %s17, 2
      %s22 = smul.addr %s21, 64
      %s23 = scalar_lea.hbm %s0, %s22
      %s24 = sshll.u32 [#allocation2], 4
      %s25 = int_to_ptr.vmem [resolvable:$true] %s24
      %30 = dma.hbm_to_vmem [thread:$0]  %s23, 256, %s25, [#allocation3], 128, 128, 8
    $region5: #{tpu_custom_call.1} parent=1 // pred_fallthru
      _
    // Predicated region
    $region6: #{tpu_custom_call.1} parent=1 // pred_check
      _
    $region7: #{tpu_custom_call.1} parent=1 // pred_check_branch
      %32 = sbr.rel (0) target = $region9
    $region8: #{tpu_custom_call.1} parent=1 // pred_region
      %s34 = ssub.s32 2048, 2048
      %35 = vsyncadd [#allocation6], %s34
      %s36 = sshll.u32 [#allocation5], 4
      %s37 = int_to_ptr.vmem [resolvable:$true] %s36
      %42 = dma.hbm_to_vmem [thread:$0]  %s1, 2048, %s37, [#allocation6], 64, 64, 4
    $region9: #{tpu_custom_call.1} parent=1 // pred_fallthru
      _
    // Predicated region
    $region10: #{tpu_custom_call.1} parent=1 // pred_check
      _
    $region11: #{tpu_custom_call.1} parent=1 // pred_check_branch
      %44 = sbr.rel (0) target = $region13
    $region12: #{tpu_custom_call.1} parent=1 // pred_region
      %s46 = ssub.s32 192, 192
      %47 = vsyncadd [#allocation6], %s46
      %s48 = sshll.u32 [#allocation7], 4
      %s49 = int_to_ptr.vmem [resolvable:$true] %s48
      %54 = dma.hbm_to_vmem [thread:$0]  %s2, 192, %s49, [#allocation6], 64, 64, 4
    $region13: #{tpu_custom_call.1} parent=1 // pred_fallthru
      _
    // Predicated region
    $region14: #{tpu_custom_call.1} parent=1 // pred_check
      _
    $region15: #{tpu_custom_call.1} parent=1 // pred_check_branch
      %56 = sbr.rel (0) target = $region17
    $region16: #{tpu_custom_call.1} parent=1 // pred_region
      %57 = dma.done [#allocation3], 256
    $region17: #{tpu_custom_call.1} parent=1 // pred_fallthru
      _
    // Predicated region
    $region18: #{tpu_custom_call.1} parent=1 // pred_check
      _
    $region19: #{tpu_custom_call.1} parent=1 // pred_check_branch
      %59 = sbr.rel (0) target = $region21
    $region20: #{tpu_custom_call.1} parent=1 // pred_region
      %60 = dma.done [#allocation6], 2048
    $region21: #{tpu_custom_call.1} parent=1 // pred_fallthru
      _
    // Predicated region
    $region22: #{tpu_custom_call.1} parent=1 // pred_check
      _
    $region23: #{tpu_custom_call.1} parent=1 // pred_check_branch
      %62 = sbr.rel (0) target = $region25
    $region24: #{tpu_custom_call.1} parent=1 // pred_region
      %63 = dma.done [#allocation6], 192
    $region25: #{tpu_custom_call.1} parent=1 // pred_fallthru
      _
    %s64 = sadd.s32 0, 0
    %s65 = smul.u32 2, %s64
    %p68 = scmp.eq.s32.totalorder 0, 0
    // Predicated region
    $region26: #{tpu_custom_call.1} parent=1 // pred_check
      %p69 = pneg %p68
    $region27: #{tpu_custom_call.1} parent=1 // pred_check_branch
      %71 = sbr.rel (%p69) target = $region29
    $region28: #{tpu_custom_call.1} parent=1 // pred_region
      %72 = vst [vmem:[#allocation8] sm:$0x1] 0.0
      %73 = vst [vmem:[#allocation9] sm:$0x1] 0.0
    $region29: #{tpu_custom_call.1} parent=1 // pred_fallthru
      _
    %v74 = vld [vmem:[#allocation2] sm:$0xff]
    %v75 = vld [vmem:[#allocation2 + $0x8] sm:$0xff]
    %vm76 = vcmp.gt.bf16.partialorder %v74, 4020432802
    %vm77 = vcmp.gt.bf16.partialorder %v75, 4020432802
    %v78 = vsel %vm76, %v74, 0
    %v79 = vsel %vm77, %v75, 0
    %v80 = vld [vmem:[#allocation5] sm:$0xf]
    %v81 = vld [vmem:[#allocation5 + $0x4] sm:$0xf]
    %v82 = vld [vmem:[#allocation5 + $0x8] sm:$0xf]
    %v83 = vld [vmem:[#allocation5 + $0xc] sm:$0xf]
    %v84 = vld [vmem:[#allocation5 + $0x10] sm:$0xf]
    %v85 = vld [vmem:[#allocation5 + $0x14] sm:$0xf]
    %v86 = vld [vmem:[#allocation5 + $0x18] sm:$0xf]
    %v87 = vld [vmem:[#allocation5 + $0x1c] sm:$0xf]
    %v88 = vld [vmem:[#allocation5 + $0x20] sm:$0xf]
    %v89 = vld [vmem:[#allocation5 + $0x24] sm:$0xf]
    %v90 = vld [vmem:[#allocation5 + $0x28] sm:$0xf]
    %v91 = vld [vmem:[#allocation5 + $0x2c] sm:$0xf]
    %v92 = vld [vmem:[#allocation5 + $0x30] sm:$0xf]
    %v93 = vld [vmem:[#allocation5 + $0x34] sm:$0xf]
    %v94 = vld [vmem:[#allocation5 + $0x38] sm:$0xf]
    %v95 = vld [vmem:[#allocation5 + $0x3c] sm:$0xf]
    %v96 = vld [vmem:[#allocation5 + $0x40] sm:$0xf]
    %v97 = vld [vmem:[#allocation5 + $0x44] sm:$0xf]
    %v98 = vld [vmem:[#allocation5 + $0x48] sm:$0xf]
    %v99 = vld [vmem:[#allocation5 + $0x4c] sm:$0xf]
    %v100 = vld [vmem:[#allocation5 + $0x50] sm:$0xf]
    %v101 = vld [vmem:[#allocation5 + $0x54] sm:$0xf]
    %v102 = vld [vmem:[#allocation5 + $0x58] sm:$0xf]
    %v103 = vld [vmem:[#allocation5 + $0x5c] sm:$0xf]
    %v104 = vld [vmem:[#allocation5 + $0x60] sm:$0xf]
    %v105 = vld [vmem:[#allocation5 + $0x64] sm:$0xf]
    %v106 = vld [vmem:[#allocation5 + $0x68] sm:$0xf]
    %v107 = vld [vmem:[#allocation5 + $0x6c] sm:$0xf]
    %v108 = vld [vmem:[#allocation5 + $0x70] sm:$0xf]
    %v109 = vld [vmem:[#allocation5 + $0x74] sm:$0xf]
    %v110 = vld [vmem:[#allocation5 + $0x78] sm:$0xf]
    %v111 = vld [vmem:[#allocation5 + $0x7c] sm:$0xf]
    %114 = vrot.lane.b32.xlu0 %v74, 104
    %v115 = vpop.permute.xlu0 %114
    %116 = vrot.lane.b32.xlu0 %v75, 104
    %v117 = vpop.permute.xlu0 %116
    %v120 = vmax.bf16 %v74, %v115
    %v121 = vmax.bf16 %v75, %v117
    %122 = vrot.lane.b32.xlu0 %v74, 80
    %v123 = vpop.permute.xlu0 %122
    %124 = vrot.lane.b32.xlu0 %v75, 80
    %v125 = vpop.permute.xlu0 %124
    %v128 = vmax.bf16 %v120, %v123
    %v129 = vmax.bf16 %v121, %v125
    %130 = vrot.lane.b32.xlu0 %v74, 56
    %v131 = vpop.permute.xlu0 %130
    %132 = vrot.lane.b32.xlu0 %v75, 56
    %v133 = vpop.permute.xlu0 %132
    %v136 = vmax.bf16 %v128, %v131
    %v137 = vmax.bf16 %v129, %v133
    %138 = vrot.lane.b32.xlu0 %v74, 32
    %v139 = vpop.permute.xlu0 %138
    %140 = vrot.lane.b32.xlu0 %v75, 32
    %v141 = vpop.permute.xlu0 %140
    %v144 = vmax.bf16 %v136, %v139
    %v145 = vmax.bf16 %v137, %v141
    %146 = vrot.lane.b32.xlu0 %v74, 8
    %v147 = vpop.permute.xlu0 %146
    %148 = vrot.lane.b32.xlu0 %v75, 8
    %v149 = vpop.permute.xlu0 %148
    %v150 = vrot.slane %v147, 4
    %v151 = vrot.slane %v149, 4
    %vm152 = vcmask 64512
    %v153 = vsel %vm152, %v147, %v150
    %v154 = vsel %vm152, %v149, %v151
    %v157 = vmax.bf16 %v144, %v153
    %v158 = vmax.bf16 %v145, %v154
    %159 = vrot.lane.b32.xlu0 %v74, 112
    %v160 = vpop.permute.xlu0 %159
    %161 = vrot.lane.b32.xlu0 %v75, 112
    %v162 = vpop.permute.xlu0 %161
    %v163 = vrot.slane %v160, 4
    %v164 = vrot.slane %v162, 4
    %v167 = vmax.bf16 %v157, %v163
    %v168 = vmax.bf16 %v158, %v164
    %169 = vrot.lane.b32.xlu0 %v74, 88
    %v170 = vpop.permute.xlu0 %169
    %171 = vrot.lane.b32.xlu0 %v75, 88
    %v172 = vpop.permute.xlu0 %171
    %v173 = vrot.slane %v170, 4
    %v174 = vrot.slane %v172, 4
    %v177 = vmax.bf16 %v167, %v173
    %v178 = vmax.bf16 %v168, %v174
    %179 = vrot.lane.b32.xlu0 %v74, 64
    %v180 = vpop.permute.xlu0 %179
    %181 = vrot.lane.b32.xlu0 %v75, 64
    %v182 = vpop.permute.xlu0 %181
    %v183 = vrot.slane %v180, 4
    %v184 = vrot.slane %v182, 4
    %v187 = vmax.bf16 %v177, %v183
    %v188 = vmax.bf16 %v178, %v184
    %v189 = vld [vmem:[#allocation7] sm:$0xf]
    %v190 = vld [vmem:[#allocation7 + $0x4] sm:$0xf]
    %v191 = vld [vmem:[#allocation7 + $0x8] sm:$0xf]
    %v194 = vunpack.c.l.b16 %v187
    %v195 = vunpack.c.l.b16 %v188
    %v196 = vpack.c.b16 %v195, %v194
    %v200 = vunpack.c.l.b16 %v189
    %v201 = vunpack.c.l.b16 %v190
    %v202 = vunpack.c.l.b16 %v191
    %v203 = vpack.c.b16 %v201, %v200
    %v204 = vpack.c.b16 %v202, %v202
    %vm206 = vcmask 195584
    %v208 = vsel %vm206, %v196, 0
    %vm210 = vcmask 1043456
    %v212 = vsel %vm210, %v204, 0
    %214 = vmatprep.subr.bf16.mxu0 0
    %215 = vmatpush1.bf16.msra.mxu0 %v203
    %216 = vmatprep.subr.bf16.mxu0 0
    %217 = vmatpush1.bf16.msra.mxu0 %v212
    %218 = vmatprep.subr.bf16.mxu0 0
    %219 = vmatpush1.bf16.msra.mxu0 0
    %220 = vmatprep.subr.bf16.mxu0 0
    %221 = vmatpush1.bf16.msra.mxu0 0
    %222 = vmatprep.subr.bf16.mxu0 0
    %223 = vmatpush1.bf16.msra.mxu0 0
    %224 = vmatprep.subr.bf16.mxu0 0
    %225 = vmatpush1.bf16.msra.mxu0 0
    %226 = vmatprep.subr.bf16.mxu0 0
    %227 = vmatpush1.bf16.msra.mxu0 0
    %228 = vmatprep.subr.bf16.mxu0 0
    %229 = vmatpush1.bf16.msra.mxu0 0
    %230 = vmatprep.subr.bf16.mxu0 0
    %231 = vmatpush1.bf16.msra.mxu0 0
    %232 = vmatprep.subr.bf16.mxu0 0
    %233 = vmatpush1.bf16.msra.mxu0 0
    %234 = vmatprep.subr.bf16.mxu0 0
    %235 = vmatpush1.bf16.msra.mxu0 0
    %236 = vmatprep.subr.bf16.mxu0 0
    %237 = vmatpush1.bf16.msra.mxu0 0
    %238 = vmatprep.subr.bf16.mxu0 0
    %239 = vmatpush1.bf16.msra.mxu0 0
    %240 = vmatprep.subr.bf16.mxu0 0
    %241 = vmatpush1.bf16.msra.mxu0 0
    %242 = vmatprep.subr.bf16.mxu0 0
    %243 = vmatpush1.bf16.msra.mxu0 0
    %244 = vmatprep.subr.bf16.mxu0 0
    %245 = vmatpush1.bf16.msra.mxu0 0
    %246 = vmatprep.mubr.bf16.mxu0 0
    %247 = vmatmul.mubr.bf16.gmra.mrb[0].mxu0 %v208
    %v248 = vpop.f32.mrb[0].mxu0
    %v249 = vadd.f32 0.0, %v248
    %v250 = vpop.f32.mrb[0].mxu0
    %v251 = vpop.f32.mrb[0].mxu0
    %v252 = vadd.f32 0.0, %v251
    %v253 = vpop.f32.mrb[0].mxu0
    %254 = vdwg.mxu0
    %v257 = vunpack.c.l.b16 %v78
    %v258 = vunpack.c.h.b16 %v78
    %v259 = vunpack.c.l.b16 %v79
    %v260 = vunpack.c.h.b16 %v79
    %v261 = vpack.c.b16 %v259, %v257
    %v262 = vpack.c.b16 %v260, %v258
    %v297 = vunpack.c.l.b16 %v80
    %v298 = vunpack.c.l.b16 %v81
    %v299 = vunpack.c.l.b16 %v82
    %v300 = vunpack.c.l.b16 %v83
    %v301 = vunpack.c.l.b16 %v84
    %v302 = vunpack.c.l.b16 %v85
    %v303 = vunpack.c.l.b16 %v86
    %v304 = vunpack.c.l.b16 %v87
    %v305 = vunpack.c.l.b16 %v88
    %v306 = vunpack.c.l.b16 %v89
    %v307 = vunpack.c.l.b16 %v90
    %v308 = vunpack.c.l.b16 %v91
    %v309 = vunpack.c.l.b16 %v92
    %v310 = vunpack.c.l.b16 %v93
    %v311 = vunpack.c.l.b16 %v94
    %v312 = vunpack.c.l.b16 %v95
    %v313 = vunpack.c.l.b16 %v96
    %v314 = vunpack.c.l.b16 %v97
    %v315 = vunpack.c.l.b16 %v98
    %v316 = vunpack.c.l.b16 %v99
    %v317 = vunpack.c.l.b16 %v100
    %v318 = vunpack.c.l.b16 %v101
    %v319 = vunpack.c.l.b16 %v102
    %v320 = vunpack.c.l.b16 %v103
    %v321 = vunpack.c.l.b16 %v104
    %v322 = vunpack.c.l.b16 %v105
    %v323 = vunpack.c.l.b16 %v106
    %v324 = vunpack.c.l.b16 %v107
    %v325 = vunpack.c.l.b16 %v108
    %v326 = vunpack.c.l.b16 %v109
    %v327 = vunpack.c.l.b16 %v110
    %v328 = vunpack.c.l.b16 %v111
    %v329 = vpack.c.b16 %v298, %v297
    %v330 = vpack.c.b16 %v300, %v299
    %v331 = vpack.c.b16 %v302, %v301
    %v332 = vpack.c.b16 %v304, %v303
    %v333 = vpack.c.b16 %v306, %v305
    %v334 = vpack.c.b16 %v308, %v307
    %v335 = vpack.c.b16 %v310, %v309
    %v336 = vpack.c.b16 %v312, %v311
    %v337 = vpack.c.b16 %v314, %v313
    %v338 = vpack.c.b16 %v316, %v315
    %v339 = vpack.c.b16 %v318, %v317
    %v340 = vpack.c.b16 %v320, %v319
    %v341 = vpack.c.b16 %v322, %v321
    %v342 = vpack.c.b16 %v324, %v323
    %v343 = vpack.c.b16 %v326, %v325
    %v344 = vpack.c.b16 %v328, %v327
    %361 = vmatprep.subr.bf16.mxu0 0
    %362 = vmatpush1.bf16.msra.mxu0 %v329
    %363 = vmatprep.subr.bf16.mxu0 0
    %364 = vmatpush1.bf16.msra.mxu0 %v330
    %365 = vmatprep.subr.bf16.mxu0 0
    %366 = vmatpush1.bf16.msra.mxu0 %v331
    %367 = vmatprep.subr.bf16.mxu0 0
    %368 = vmatpush1.bf16.msra.mxu0 %v332
    %369 = vmatprep.subr.bf16.mxu0 0
    %370 = vmatpush1.bf16.msra.mxu0 %v333
    %371 = vmatprep.subr.bf16.mxu0 0
    %372 = vmatpush1.bf16.msra.mxu0 %v334
    %373 = vmatprep.subr.bf16.mxu0 0
    %374 = vmatpush1.bf16.msra.mxu0 %v335
    %375 = vmatprep.subr.bf16.mxu0 0
    %376 = vmatpush1.bf16.msra.mxu0 %v336
    %377 = vmatprep.subr.bf16.mxu0 0
    %378 = vmatpush1.bf16.msra.mxu0 %v337
    %379 = vmatprep.subr.bf16.mxu0 0
    %380 = vmatpush1.bf16.msra.mxu0 %v338
    %381 = vmatprep.subr.bf16.mxu0 0
    %382 = vmatpush1.bf16.msra.mxu0 %v339
    %383 = vmatprep.subr.bf16.mxu0 0
    %384 = vmatpush1.bf16.msra.mxu0 %v340
    %385 = vmatprep.subr.bf16.mxu0 0
    %386 = vmatpush1.bf16.msra.mxu0 %v341
    %387 = vmatprep.subr.bf16.mxu0 0
    %388 = vmatpush1.bf16.msra.mxu0 %v342
    %389 = vmatprep.subr.bf16.mxu0 0
    %390 = vmatpush1.bf16.msra.mxu0 %v343
    %391 = vmatprep.subr.bf16.mxu0 0
    %392 = vmatpush1.bf16.msra.mxu0 %v344
    %393 = vmatprep.mubr.bf16.mxu0 %v262
    %394 = vmatmul.mubr.bf16.gmra.mrb[0].mxu0 %v261
    %v395 = vpop.f32.mrb[0].mxu0
    %v396 = vadd.f32 %v249, %v395
    %v397 = vpop.f32.mrb[0].mxu0
    %v398 = vpop.f32.mrb[0].mxu0
    %v399 = vadd.f32 %v252, %v398
    %v400 = vpop.f32.mrb[0].mxu0
    %401 = vdwg.mxu0
    %v402 = vld [vmem:[#allocation8] sm:$0x1]
    %v403 = vadd.f32 %v396, %v399
    %v404 = vrot.slane %v403, 4
    %v405 = vadd.f32 %v403, %v404
    %v406 = vrot.slane %v405, 2
    %v407 = vadd.f32 %v405, %v406
    %v408 = vrot.slane %v407, 1
    %v409 = vadd.f32 %v407, %v408
    %v410 = vadd.f32 %v402, %v409
    %411 = vst [vmem:[#allocation8] sm:$0x1] %v410
    %v412 = vld [vmem:[#allocation9] sm:$0x1]
    %v413 = vmul.f32 %v396, %v396
    %v414 = vmul.f32 %v399, %v399
    %v415 = vadd.f32 %v413, %v414
    %v416 = vrot.slane %v415, 4
    %v417 = vadd.f32 %v415, %v416
    %v418 = vrot.slane %v417, 2
    %v419 = vadd.f32 %v417, %v418
    %v420 = vrot.slane %v419, 1
    %v421 = vadd.f32 %v419, %v420
    %v422 = vadd.f32 %v412, %v421
    %423 = vst [vmem:[#allocation9] sm:$0x1] %v422
    // Predicated region
    $region30: #{tpu_custom_call.1} parent=1 // pred_check
      _
    $region31: #{tpu_custom_call.1} parent=1 // pred_check_branch
      %425 = sbr.rel (0) target = $region33
    $region32: #{tpu_custom_call.1} parent=1 // pred_region
      %s427 = ssub.s32 16, 16
      %428 = vsyncadd [#allocation4], %s427
      %s430 = sshll.u32 [#allocation8], 4
      %s431 = int_to_ptr.vmem [resolvable:$true] %s430
      %433 = dma.vmem_to_hbm [thread:$0]  %s431, 16, %s3, [#allocation4]
    $region33: #{tpu_custom_call.1} parent=1 // pred_fallthru
      _
    // Predicated region
    $region34: #{tpu_custom_call.1} parent=1 // pred_check
      _
    $region35: #{tpu_custom_call.1} parent=1 // pred_check_branch
      %435 = sbr.rel (0) target = $region37
    $region36: #{tpu_custom_call.1} parent=1 // pred_region
      %s437 = ssub.s32 16, 16
      %438 = vsyncadd [#allocation10], %s437
      %s440 = sshll.u32 [#allocation9], 4
      %s441 = int_to_ptr.vmem [resolvable:$true] %s440
      %443 = dma.vmem_to_hbm [thread:$0]  %s441, 16, %s4, [#allocation10]
    $region37: #{tpu_custom_call.1} parent=1 // pred_fallthru
      _
    // Predicated region
    $region38: #{tpu_custom_call.1} parent=1 // pred_check
      _
    $region39: #{tpu_custom_call.1} parent=1 // pred_check_branch
      %445 = sbr.rel (0) target = $region41
    $region40: #{tpu_custom_call.1} parent=1 // pred_region
      %446 = dma.done [#allocation4], 16
    $region41: #{tpu_custom_call.1} parent=1 // pred_fallthru
      _
    // Predicated region
    $region42: #{tpu_custom_call.1} parent=1 // pred_check
      _
    $region43: #{tpu_custom_call.1} parent=1 // pred_check_branch
      %448 = sbr.rel (0) target = $region45
    $region44: #{tpu_custom_call.1} parent=1 // pred_region
      %449 = dma.done [#allocation10], 16
    $region45: #{tpu_custom_call.1} parent=1 // pred_fallthru
      _
    %450 = vsyncpa [#allocation3], 1
    %451 = vsyncpa [#allocation6], 1
    %452 = vsyncpa [#allocation4], 1
    %453 = vsyncpa [#allocation10], 1

</llo_original>
